<compile_context>
chip_gen: v7x
topology: tpu7x:2x2x1
jax: 0.10.0
libtpu: 0.0.40
codegen_flags: <defaults>
</compile_context>

<pallas_src>
import functools

import jax
import jax.numpy as jnp
from jax.experimental import pallas as pl
from jax.experimental.pallas import tpu as pltpu


def _round_up(x, m):
    return ((x + m - 1) // m) * m


# -----------------------------------------------------------------------------
# Pallas kernel: (tm, Kp) patch rows @ (Kp, E) weight + bias -> (tm, E)
# -----------------------------------------------------------------------------
def _patch_embed_kernel(p_ref, w_ref, b_ref, o_ref):
    acc = jnp.dot(p_ref[...], w_ref[...], preferred_element_type=jnp.float32)
    o_ref[...] = (acc + b_ref[...]).astype(o_ref.dtype)


def patch_embed_pallas(x, weight, bias, patch_size, *, tm=512, use_bf16_matmul=False):
    """x: (b, t, c, h, w); weight: (E, c, P, P); bias: (E,) -> ((b t), hp*wp, E)."""
    b, t, c, h, w = x.shape
    P = int(patch_size)
    assert h % P == 0 and w % P == 0, "image size must be divisible by patch size"
    hp, wp = h // P, w // P
    num_patches = hp * wp
    E = weight.shape[0]
    BT = b * t
    M = BT * num_patches
    K = c * P * P
    Kp = _round_up(K, 128)                      # lane-dense contraction depth

    in_dtype = jnp.bfloat16 if use_bf16_matmul else jnp.float32
    out_dtype = jnp.bfloat16 if use_bf16_matmul else jnp.float32

    # --- im2col (layout plumbing; fused into the pallas input via allow_input_fusion) ---
    # order (c, ph, pw) matches Conv2d weight.reshape(E, c*P*P)
    xr = x.reshape(BT, c, hp, P, wp, P)
    patches = xr.transpose(0, 2, 4, 1, 3, 5).reshape(M, K).astype(in_dtype)
    w2 = weight.reshape(E, K).T.astype(in_dtype)                 # (K, E)
    if Kp != K:
        patches = jnp.pad(patches, ((0, 0), (0, Kp - K)))
        w2 = jnp.pad(w2, ((0, Kp - K), (0, 0)))
    b2 = bias.astype(jnp.float32).reshape(1, E)

    # --- fixed tile on M; ragged last block is masked by Pallas ---
    tm = min(int(tm), _round_up(M, 8))
    tm = _round_up(tm, 8)
    grid = (pl.cdiv(M, tm),)

    in_item = jnp.dtype(in_dtype).itemsize
    out_item = jnp.dtype(out_dtype).itemsize
    vmem_need = (2 * tm * Kp * in_item            # double-buffered patch blocks
                 + 2 * tm * E * out_item          # double-buffered output blocks
                 + 2 * (Kp * E * in_item + E * 4))  # resident weight + bias
    vmem_limit = int(min(64 << 20, max(32 << 20, 2 * vmem_need)))

    cost = pl.CostEstimate(
        flops=2 * M * Kp * E,
        transcendentals=0,
        bytes_accessed=in_item * (M * Kp + Kp * E) + out_item * M * E + 4 * E,
    )

    out = pl.pallas_call(
        _patch_embed_kernel,
        out_shape=jax.ShapeDtypeStruct((M, E), out_dtype),
        grid=grid,
        in_specs=[
            pl.BlockSpec((tm, Kp), lambda i: (i, 0)),   # streamed patch rows
            pl.BlockSpec((Kp, E), lambda i: (0, 0)),    # resident projection weight
            pl.BlockSpec((1, E), lambda i: (0, 0)),     # resident bias
        ],
        out_specs=pl.BlockSpec((tm, E), lambda i: (i, 0)),
        compiler_params=pltpu.CompilerParams(
            dimension_semantics=("parallel",),
            allow_input_fusion=[True, False, False],    # fuse im2col/pad/cast into input 0
            vmem_limit_bytes=vmem_limit,
        ),
        cost_estimate=cost,
    )(patches, w2, b2)

    return out.reshape(BT, num_patches, E)


# -----------------------------------------------------------------------------
# Pure-JAX reference: the actual strided conv (PyTorch Conv2d semantics)
# -----------------------------------------------------------------------------
def patch_embed_ref(x, weight, bias, patch_size):
    b, t, c, h, w = x.shape
    xr = x.reshape(b * t, c, h, w)
    out = jax.lax.conv_general_dilated(
        xr, weight, window_strides=(patch_size, patch_size), padding="VALID",
        dimension_numbers=("NCHW", "OIHW", "NCHW"),
        precision=jax.lax.Precision.HIGHEST)
    out = out + bias.reshape(1, -1, 1, 1)
    bt, e, hp, wp = out.shape
    return out.transpose(0, 2, 3, 1).reshape(bt, hp * wp, e)   # 'b c h w -> b (h w) c'


def _run_case(key, *, b, t, c, img, P, E, tm, use_bf16, atol, rtol):
    kx, kw = jax.random.split(key)
    x = jax.random.normal(kx, (b, t, c, img, img), jnp.float32)
    fan_in = c * P * P                                     # kaiming fan_in, relu gain
    weight = jax.random.normal(kw, (E, c, P, P), jnp.float32) * (2.0 / fan_in) ** 0.5
    bias = jnp.zeros((E,), jnp.float32)

    fn = jax.jit(functools.partial(patch_embed_pallas, patch_size=P, tm=tm,
                                   use_bf16_matmul=use_bf16))
    out = jax.block_until_ready(fn(x, weight, bias))
    ref = jax.block_until_ready(patch_embed_ref(x, weight, bias, P))

    num_patches = (img // P) ** 2
    assert out.shape == (b * t, num_patches, E), out.shape
    max_err = float(jnp.max(jnp.abs(out.astype(jnp.float32) - ref)))
    assert jnp.allclose(out.astype(jnp.float32), ref, atol=atol, rtol=rtol), max_err


if __name__ == "__main__":
    key = jax.random.PRNGKey(0)
    k1, k2, k3 = jax.random.split(key, 3)

    # f32 path: batch=2, frames=2, c=3, img=16, patch=4, embed_dims=128 (M=64, one block)
    _run_case(k1, b=2, t=2, c=3, img=16, P=4, E=128, tm=512, use_bf16=False,
              atol=1e-2, rtol=1e-2)
    # ragged-last-block path: M = 3*3*16 = 144 with tm=64 -> grid=(3,), last block masked
    _run_case(k2, b=3, t=3, c=3, img=16, P=4, E=128, tm=64, use_bf16=False,
              atol=1e-2, rtol=1e-2)
    # bf16 MXU inputs + bf16 output (f32 accumulation) — validates the quantized path
    _run_case(k3, b=2, t=2, c=3, img=16, P=4, E=128, tm=512, use_bf16=True,
              atol=6e-2, rtol=6e-2)

    print("KERNEL_OK")
</pallas_src>

<mosaic_0001>
module attributes {stable_mosaic.version = 11 : i64} {
  func.func @_patch_embed_kernel(%arg0: i32, %arg1: memref<64x128xf32, #tpu.memory_space<vmem>>, %arg2: memref<128x128xf32, #tpu.memory_space<vmem>>, %arg3: memref<1x128xf32, #tpu.memory_space<vmem>>, %arg4: memref<64x128xf32, #tpu.memory_space<vmem>>) attributes {dimension_semantics = [#tpu.dimension_semantics<parallel>], iteration_bounds = array<i64: 1>, scalar_prefetch = 0 : i64, scratch_operands = 0 : i64, tpu.core_type = #tpu.core_type<tc>, window_params = [{transform_indices = @transform_0, window_bounds = array<i64: 64, 128>}, {pipeline_mode = #tpu.pipeline_mode<synchronous>, transform_indices = @transform_1, window_bounds = array<i64: 128, 128>}, {pipeline_mode = #tpu.pipeline_mode<synchronous>, transform_indices = @transform_2, window_bounds = array<i64: 1, 128>}, {transform_indices = @transform_3, window_bounds = array<i64: 64, 128>}]} {
    %c0 = arith.constant 0 : index
    %c0_0 = arith.constant 0 : index
    %0 = vector.load %arg1[%c0, %c0_0] : memref<64x128xf32, #tpu.memory_space<vmem>>, vector<64x128xf32>
    %c0_1 = arith.constant 0 : index
    %c0_2 = arith.constant 0 : index
    %1 = vector.load %arg2[%c0_1, %c0_2] : memref<128x128xf32, #tpu.memory_space<vmem>>, vector<128x128xf32>
    %cst = arith.constant dense<0.000000e+00> : vector<64x128xf32>
    %2 = tpu.matmul %0, %1, %cst {dimension_numbers = #tpu.dot_dimension_numbers<[1], [0], [0], [1], [0, 0, 1, 1], [], []>} : vector<64x128xf32>, vector<128x128xf32>, vector<64x128xf32> -> vector<64x128xf32>
    %c0_3 = arith.constant 0 : index
    %c0_4 = arith.constant 0 : index
    %3 = vector.load %arg3[%c0_3, %c0_4] : memref<1x128xf32, #tpu.memory_space<vmem>>, vector<1x128xf32>
    %4 = vector.broadcast %3 : vector<1x128xf32> to vector<64x128xf32>
    %5 = arith.addf %2, %4 : vector<64x128xf32>
    %c0_5 = arith.constant 0 : index
    %c0_6 = arith.constant 0 : index
    %6 = vector.load %arg4[%c0_5, %c0_6] : memref<64x128xf32, #tpu.memory_space<vmem>>, vector<64x128xf32>
    tpu.vector_store %arg4[%c0_5, %c0_6], %5 {strides = array<i32>} : memref<64x128xf32, #tpu.memory_space<vmem>>, vector<64x128xf32>,
    return
  }
  func.func @transform_0(%arg0: i32) -> (i32, i32) {
    %c0_i32 = arith.constant 0 : i32
    %c0_i32_0 = arith.constant 0 : i32
    return %arg0, %c0_i32 : i32, i32
  }
  func.func @transform_1(%arg0: i32) -> (i32, i32) {
    %c0_i32 = arith.constant 0 : i32
    %c0_i32_0 = arith.constant 0 : i32
    %c0_i32_1 = arith.constant 0 : i32
    return %c0_i32, %c0_i32_0 : i32, i32
  }
  func.func @transform_2(%arg0: i32) -> (i32, i32) {
    %c0_i32 = arith.constant 0 : i32
    %c0_i32_0 = arith.constant 0 : i32
    %c0_i32_1 = arith.constant 0 : i32
    return %c0_i32, %c0_i32_0 : i32, i32
  }
  func.func @transform_3(%arg0: i32) -> (i32, i32) {
    %c0_i32 = arith.constant 0 : i32
    %c0_i32_0 = arith.constant 0 : i32
    return %arg0, %c0_i32 : i32, i32
  }
}

</mosaic_0001>

<llo_original>
// kernel: patch_embed_pallas.2
$region0: #{patch_embed_pallas.2}
  #allocation0 [shape = 'u32[]', space=smem, size = 0x4, offset = 0x4, fixed_abs, tag = 'smem constant byte address 0x4 - core index']
  #allocation1 [shape = 'u32[144,128]{1,0:T(1,128)}', space=vmem, size = 0x12000, scoped, tag = 'internal scratch']
  #allocation2 [shape = 'u32[2048]{0}', space=vmem, size = 0x2000, scoped, tag = 'scoped memory for patch_embed_pallas.2']
  #allocation3 [shape = 'u32[2048]{0}', space=vmem, size = 0x2000, scoped, tag = 'scoped memory for patch_embed_pallas.2']
  #allocation4 [shape = 'u32[2048]{0}', space=vmem, size = 0x2000, scoped, tag = 'scoped memory for patch_embed_pallas.2']
  #allocation5 [shape = 'u32[2048]{0}', space=vmem, size = 0x2000, scoped, tag = 'scoped memory for patch_embed_pallas.2']
  #allocation6 [shape = 'u32[2048]{0}', space=vmem, size = 0x2000, scoped, tag = 'scoped memory for patch_embed_pallas.2']
  %s0 = inlined_call_operand.vmem [shape: f32[128,128], index: 0, kind: input, shape index: {}]
  %s1 = inlined_call_operand.vmem [shape: f32[1,128], index: 1, kind: input, shape index: {}]
  %s2 = inlined_call_operand.vmem [shape: f32[64,48], index: 2, kind: input, shape index: {}]
  %s3 = inlined_call_operand.<no memory space> [shape: f32[], index: 3, kind: input, shape index: {}]
  %s4 = inlined_call_operand.hbm [shape: f32[64,128], index: 4, kind: output, shape index: {}]
  %s5 = sld [smem:[#allocation0]]
  $region22: #{patch_embed_pallas.2} parent=0
    _
  %s7 = ssub.s32 1, %s5
  %s8 = scalar_select 0, %s7, %s5
  %v9 = vstv %s3
  $region1: #{patch_embed_pallas.2} parent=0
    #allocation7 [shape = 'u8[32768]{0}', space=vmem, size = 0x8000, scoped, tag = 'output window, operand 0, single buffered']
    #allocation8 [shape = 's32[1]{0}', space=sflag, size = 0x4, scoped, tag = 'scoped memory for patch_embed_pallas.2']
    #allocation9 [shape = 'u8[32768]{0}', space=vmem, size = 0x8000, dematerialized = true, scoped, tag = 'FusionAdapter Buffer %fusion.1 = f32[64,128]{1,0:T(8,128)} fusion(%param_2.1, %param_3), kind=kLoop, calls=%fused_computation.1.clone, metadata={op_name="jit(patch_embed_pallas)/jit(_pad)/pad" stack_frame_id=11}']
    %10 = vsyncpa [#allocation8], 0
    // Predicated region
    $region2: #{patch_embed_pallas.2} parent=1 // pred_check
      _
    $region3: #{patch_embed_pallas.2} parent=1 // pred_check_branch
      %12 = sbr.rel (0) target = $region5
    $region4: #{patch_embed_pallas.2} parent=1 // pred_region
      _
    $region5: #{patch_embed_pallas.2} parent=1 // pred_fallthru
      _
    // Predicated region
    $region6: #{patch_embed_pallas.2} parent=1 // pred_check
      _
    $region7: #{patch_embed_pallas.2} parent=1 // pred_check_branch
      %14 = sbr.rel (0) target = $region9
    $region8: #{patch_embed_pallas.2} parent=1 // pred_region
      _
    $region9: #{patch_embed_pallas.2} parent=1 // pred_fallthru
      _
    // Predicated region
    $region10: #{patch_embed_pallas.2} parent=1 // pred_check
      _
    $region11: #{patch_embed_pallas.2} parent=1 // pred_check_branch
      %16 = sbr.rel (0) target = $region13
    $region12: #{patch_embed_pallas.2} parent=1 // pred_region
      _
    $region13: #{patch_embed_pallas.2} parent=1 // pred_fallthru
      _
    %v17 = vld [vmem:[%s2] sm:$0xff]
    %v18 = vlaneseq
    %v19 = vand.u32 %v18, 127
    %vm21 = vcmp.lt.s32.totalorder %v19, 48
    %v22 = vsel %vm21, %v17, %v9
    %24 = vst [vmem:[#allocation9] sm:$0xff] %v22
    %s25 = scalar_lea.vmem %s2, 8
    %v26 = vld [vmem:[%s25] sm:$0xff]
    %v27 = vlaneseq
    %v28 = vand.u32 %v27, 127
    %vm30 = vcmp.lt.s32.totalorder %v28, 48
    %v31 = vsel %vm30, %v26, %v9
    %s32 = scalar_lea.vmem [#allocation9], 8
    %34 = vst [vmem:[%s32] sm:$0xff] %v31
    %s35 = scalar_lea.vmem %s2, 16
    %v36 = vld [vmem:[%s35] sm:$0xff]
    %v37 = vlaneseq
    %v38 = vand.u32 %v37, 127
    %vm40 = vcmp.lt.s32.totalorder %v38, 48
    %v41 = vsel %vm40, %v36, %v9
    %s42 = scalar_lea.vmem [#allocation9], 16
    %44 = vst [vmem:[%s42] sm:$0xff] %v41
    %s45 = scalar_lea.vmem %s2, 24
    %v46 = vld [vmem:[%s45] sm:$0xff]
    %v47 = vlaneseq
    %v48 = vand.u32 %v47, 127
    %vm50 = vcmp.lt.s32.totalorder %v48, 48
    %v51 = vsel %vm50, %v46, %v9
    %s52 = scalar_lea.vmem [#allocation9], 24
    %54 = vst [vmem:[%s52] sm:$0xff] %v51
    %s55 = scalar_lea.vmem %s2, 32
    %v56 = vld [vmem:[%s55] sm:$0xff]
    %v57 = vlaneseq
    %v58 = vand.u32 %v57, 127
    %vm60 = vcmp.lt.s32.totalorder %v58, 48
    %v61 = vsel %vm60, %v56, %v9
    %s62 = scalar_lea.vmem [#allocation9], 32
    %64 = vst [vmem:[%s62] sm:$0xff] %v61
    %s65 = scalar_lea.vmem %s2, 40
    %v66 = vld [vmem:[%s65] sm:$0xff]
    %v67 = vlaneseq
    %v68 = vand.u32 %v67, 127
    %vm70 = vcmp.lt.s32.totalorder %v68, 48
    %v71 = vsel %vm70, %v66, %v9
    %s72 = scalar_lea.vmem [#allocation9], 40
    %74 = vst [vmem:[%s72] sm:$0xff] %v71
    %s75 = scalar_lea.vmem %s2, 48
    %v76 = vld [vmem:[%s75] sm:$0xff]
    %v77 = vlaneseq
    %v78 = vand.u32 %v77, 127
    %vm80 = vcmp.lt.s32.totalorder %v78, 48
    %v81 = vsel %vm80, %v76, %v9
    %s82 = scalar_lea.vmem [#allocation9], 48
    %84 = vst [vmem:[%s82] sm:$0xff] %v81
    %s85 = scalar_lea.vmem %s2, 56
    %v86 = vld [vmem:[%s85] sm:$0xff]
    %v87 = vlaneseq
    %v88 = vand.u32 %v87, 127
    %vm90 = vcmp.lt.s32.totalorder %v88, 48
    %v91 = vsel %vm90, %v86, %v9
    %s92 = scalar_lea.vmem [#allocation9], 56
    %94 = vst [vmem:[%s92] sm:$0xff] %v91
    %v95 = vld [vmem:[#allocation9] sm:$0xff]
    %v96 = vld [vmem:[#allocation9 + $0x8] sm:$0xff]
    %v97 = vld [vmem:[#allocation9 + $0x10] sm:$0xff]
    %v98 = vld [vmem:[#allocation9 + $0x18] sm:$0xff]
    %v99 = vld [vmem:[#allocation9 + $0x20] sm:$0xff]
    %v100 = vld [vmem:[#allocation9 + $0x28] sm:$0xff]
    %v101 = vld [vmem:[#allocation9 + $0x30] sm:$0xff]
    %v102 = vld [vmem:[#allocation9 + $0x38] sm:$0xff]
    %v103 = vld [vmem:[%s0] sm:$0xff]
    %v104 = vld [vmem:[%s0 + $0x8] sm:$0xff]
    %v105 = vld [vmem:[%s0 + $0x10] sm:$0xff]
    %v106 = vld [vmem:[%s0 + $0x18] sm:$0xff]
    %v107 = vld [vmem:[%s0 + $0x20] sm:$0xff]
    %v108 = vld [vmem:[%s0 + $0x28] sm:$0xff]
    %v109 = vld [vmem:[%s0 + $0x30] sm:$0xff]
    %v110 = vld [vmem:[%s0 + $0x38] sm:$0xff]
    %v111 = vld [vmem:[%s0 + $0x40] sm:$0xff]
    %v112 = vld [vmem:[%s0 + $0x48] sm:$0xff]
    %v113 = vld [vmem:[%s0 + $0x50] sm:$0xff]
    %v114 = vld [vmem:[%s0 + $0x58] sm:$0xff]
    %v115 = vld [vmem:[%s0 + $0x60] sm:$0xff]
    %v116 = vld [vmem:[%s0 + $0x68] sm:$0xff]
    %v117 = vld [vmem:[%s0 + $0x70] sm:$0xff]
    %v118 = vld [vmem:[%s0 + $0x78] sm:$0xff]
    %v119 = vld [vmem:[%s1] sm:$0x1]
    %v121 = vlaneseq
    %v122 = vshrl.u32 %v121, 7
    %v123 = vsub.s32 0, %v122
    %v124 = vrot.slane %v119, %v123
    %126 = vmatprep.subr.mxu0 0.0
    %127 = vmatpush1.msra.mxu0 %v103
    %128 = vmatprep.subr.mxu0 0.0
    %129 = vmatpush1.msra.mxu0 %v104
    %130 = vmatprep.subr.mxu0 0.0
    %131 = vmatpush1.msra.mxu0 %v105
    %132 = vmatprep.subr.mxu0 0.0
    %133 = vmatpush1.msra.mxu0 %v106
    %134 = vmatprep.subr.mxu0 0.0
    %135 = vmatpush1.msra.mxu0 %v107
    %136 = vmatprep.subr.mxu0 0.0
    %137 = vmatpush1.msra.mxu0 %v108
    %138 = vmatprep.subr.mxu0 0.0
    %139 = vmatpush1.msra.mxu0 %v109
    %140 = vmatprep.subr.mxu0 0.0
    %141 = vmatpush1.msra.mxu0 %v110
    %142 = vmatprep.subr.mxu0 0.0
    %143 = vmatpush1.msra.mxu0 %v111
    %144 = vmatprep.subr.mxu0 0.0
    %145 = vmatpush1.msra.mxu0 %v112
    %146 = vmatprep.subr.mxu0 0.0
    %147 = vmatpush1.msra.mxu0 %v113
    %148 = vmatprep.subr.mxu0 0.0
    %149 = vmatpush1.msra.mxu0 %v114
    %150 = vmatprep.subr.mxu0 0.0
    %151 = vmatpush1.msra.mxu0 %v115
    %152 = vmatprep.subr.mxu0 0.0
    %153 = vmatpush1.msra.mxu0 %v116
    %154 = vmatprep.subr.mxu0 0.0
    %155 = vmatpush1.msra.mxu0 %v117
    %156 = vmatprep.subr.mxu0 0.0
    %157 = vmatpush1.msra.mxu0 %v118
    %158 = vmatprep.subr.mxu0 0.0
    %159 = vmatpush1.msra.mxu0 0.0
    %160 = vmatprep.subr.mxu0 0.0
    %161 = vmatpush1.msra.mxu0 0.0
    %162 = vmatprep.subr.mxu0 0.0
    %163 = vmatpush1.msra.mxu0 0.0
    %164 = vmatprep.subr.mxu0 0.0
    %165 = vmatpush1.msra.mxu0 0.0
    %166 = vmatprep.subr.mxu0 0.0
    %167 = vmatpush1.msra.mxu0 0.0
    %168 = vmatprep.subr.mxu0 0.0
    %169 = vmatpush1.msra.mxu0 0.0
    %170 = vmatprep.subr.mxu0 0.0
    %171 = vmatpush1.msra.mxu0 0.0
    %172 = vmatprep.subr.mxu0 0.0
    %173 = vmatpush1.msra.mxu0 0.0
    %174 = vmatprep.subr.mxu0 0.0
    %175 = vmatpush1.msra.mxu0 0.0
    %176 = vmatprep.subr.mxu0 0.0
    %177 = vmatpush1.msra.mxu0 0.0
    %178 = vmatprep.subr.mxu0 0.0
    %179 = vmatpush1.msra.mxu0 0.0
    %180 = vmatprep.subr.mxu0 0.0
    %181 = vmatpush1.msra.mxu0 0.0
    %182 = vmatprep.subr.mxu0 0.0
    %183 = vmatpush1.msra.mxu0 0.0
    %184 = vmatprep.subr.mxu0 0.0
    %185 = vmatpush1.msra.mxu0 0.0
    %186 = vmatprep.subr.mxu0 0.0
    %187 = vmatpush1.msra.mxu0 0.0
    %188 = vmatprep.subr.mxu0 0.0
    %189 = vmatpush1.msra.mxu0 0.0
    %190 = vmatprep.mubr.f32.mxu0 0.0
    %191 = vmatmul.mubr.f32.gmra.mrb[0].mxu0 %v95
    %v192 = vpop.f32.mrb[0].mxu0
    %v193 = vadd.f32 %v124, %v192
    %v194 = vpop.f32.mrb[0].mxu0
    %195 = vmatprep.mubr.f32.mxu0 0.0
    %196 = vmatmul.mubr.f32.gmra.mrb[0].mxu0 %v96
    %v197 = vpop.f32.mrb[0].mxu0
    %v198 = vadd.f32 %v124, %v197
    %v199 = vpop.f32.mrb[0].mxu0
    %200 = vmatprep.mubr.f32.mxu0 0.0
    %201 = vmatmul.mubr.f32.gmra.mrb[0].mxu0 %v97
    %v202 = vpop.f32.mrb[0].mxu0
    %v203 = vadd.f32 %v124, %v202
    %v204 = vpop.f32.mrb[0].mxu0
    %205 = vmatprep.mubr.f32.mxu0 0.0
    %206 = vmatmul.mubr.f32.gmra.mrb[0].mxu0 %v98
    %v207 = vpop.f32.mrb[0].mxu0
    %v208 = vadd.f32 %v124, %v207
    %v209 = vpop.f32.mrb[0].mxu0
    %210 = vmatprep.mubr.f32.mxu0 0.0
    %211 = vmatmul.mubr.f32.gmra.mrb[0].mxu0 %v99
    %v212 = vpop.f32.mrb[0].mxu0
    %v213 = vadd.f32 %v124, %v212
    %v214 = vpop.f32.mrb[0].mxu0
    %215 = vmatprep.mubr.f32.mxu0 0.0
    %216 = vmatmul.mubr.f32.gmra.mrb[0].mxu0 %v100
    %v217 = vpop.f32.mrb[0].mxu0
    %v218 = vadd.f32 %v124, %v217
    %v219 = vpop.f32.mrb[0].mxu0
    %220 = vmatprep.mubr.f32.mxu0 0.0
    %221 = vmatmul.mubr.f32.gmra.mrb[0].mxu0 %v101
    %v222 = vpop.f32.mrb[0].mxu0
    %v223 = vadd.f32 %v124, %v222
    %v224 = vpop.f32.mrb[0].mxu0
    %225 = vmatprep.mubr.f32.mxu0 0.0
    %226 = vmatmul.mubr.f32.gmra.mrb[0].mxu0 %v102
    %v227 = vpop.f32.mrb[0].mxu0
    %v228 = vadd.f32 %v124, %v227
    %v229 = vpop.f32.mrb[0].mxu0
    %230 = vdwg.mxu0
    %231 = vst [vmem:[#allocation7] sm:$0xff] %v193
    %232 = vst [vmem:[#allocation7 + $0x8] sm:$0xff] %v198
    %233 = vst [vmem:[#allocation7 + $0x10] sm:$0xff] %v203
    %234 = vst [vmem:[#allocation7 + $0x18] sm:$0xff] %v208
    %235 = vst [vmem:[#allocation7 + $0x20] sm:$0xff] %v213
    %236 = vst [vmem:[#allocation7 + $0x28] sm:$0xff] %v218
    %237 = vst [vmem:[#allocation7 + $0x30] sm:$0xff] %v223
    %238 = vst [vmem:[#allocation7 + $0x38] sm:$0xff] %v228
    // Predicated region
    $region14: #{patch_embed_pallas.2} parent=1 // pred_check
      _
    $region15: #{patch_embed_pallas.2} parent=1 // pred_check_branch
      %240 = sbr.rel (0) target = $region17
    $region16: #{patch_embed_pallas.2} parent=1 // pred_region
      %s242 = ssub.s32 1024, 1024
      %243 = vsyncadd [#allocation8], %s242
      %s244 = sshll.u32 [#allocation7], 4
      %s245 = int_to_ptr.vmem [resolvable:$true] %s244
      %250 = dma.vmem_to_hbm [thread:$0]  %s245, 1024, %s4, [#allocation8], 128, 128, 8
    $region17: #{patch_embed_pallas.2} parent=1 // pred_fallthru
      _
    // Predicated region
    $region18: #{patch_embed_pallas.2} parent=1 // pred_check
      _
    $region19: #{patch_embed_pallas.2} parent=1 // pred_check_branch
      %252 = sbr.rel (0) target = $region21
    $region20: #{patch_embed_pallas.2} parent=1 // pred_region
      %253 = dma.done [#allocation8], 1024
    $region21: #{patch_embed_pallas.2} parent=1 // pred_fallthru
      _
    %254 = vsyncpa [#allocation8], 1

</llo_original>
